<compile_context>
chip_gen: v5e
topology: v5e:2x2
jax: 0.10.0
libtpu: 0.0.40
codegen_flags: <defaults>
</compile_context>

<pallas_src>
import functools

import jax
import jax.numpy as jnp
from jax.experimental import pallas as pl
from jax.experimental.pallas import tpu as pltpu

LN_EPS = 1e-5          # torch.nn.LayerNorm default
LANE = 128             # TPU lane width


def _round_up(n, m):
    return (n + m - 1) // m * m


# ---------------------------------------------------------------------------
# Feature probe: can grid-invariant inputs be single-buffered (pl.Buffered(1))?
# ---------------------------------------------------------------------------
def _probe_single_buffered_weights():
    try:
        def k(x_ref, w_ref, o_ref):
            o_ref[...] = x_ref[...] + w_ref[...]

        f = pl.pallas_call(
            k,
            out_shape=jax.ShapeDtypeStruct((16, LANE), jnp.float32),
            grid=(2,),
            in_specs=[
                pl.BlockSpec((8, LANE), lambda i: (i, 0)),
                pl.BlockSpec((8, LANE), lambda i: (0, 0),
                             pipeline_mode=pl.Buffered(1)),
            ],
            out_specs=pl.BlockSpec((8, LANE), lambda i: (i, 0)),
        )
        x = jnp.arange(16 * LANE, dtype=jnp.float32).reshape(16, LANE)
        w = jnp.ones((8, LANE), jnp.float32)
        out = jax.jit(f)(x, w)
        return bool(jnp.allclose(out, x + 1.0))
    except Exception:
        return False


_SINGLE_BUF_WEIGHTS = _probe_single_buffered_weights()


def _broadcast_spec(shape, grid_rank):
    """BlockSpec for a grid-invariant (weight) input; single-buffered if possible."""
    nd = len(shape)
    if grid_rank == 1:
        index_map = lambda i: (0,) * nd
    else:
        index_map = lambda i, k: (0,) * nd
    if _SINGLE_BUF_WEIGHTS:
        return pl.BlockSpec(shape, index_map, pipeline_mode=pl.Buffered(1))
    return pl.BlockSpec(shape, index_map)


# ---------------------------------------------------------------------------
# Hardware query (trace time).  Heuristic: only v7x has 64 MiB VMEM per TC and
# two TensorCores; v5e/v6e have 128 MiB and one core.
# ---------------------------------------------------------------------------
def _tpu_vmem_and_cores():
    try:
        info = pltpu.get_tpu_info()
        vmem = int(info.vmem_capacity_bytes)
    except Exception:
        vmem = 64 << 20                      # conservative fallback
    num_cores = 2 if vmem <= (64 << 20) else 1
    return vmem, num_cores


def _compiler_params(vmem_est_bytes, vmem_capacity, dims):
    # Leave headroom for compiler scratch / I/O double buffers:
    # ~48 MiB cap on v7x, ~96 MiB cap on v5e/v6e.
    cap = (vmem_capacity * 3) // 4
    vmem_limit = min(max(int(1.25 * vmem_est_bytes) + (8 << 20), 32 << 20), cap)
    return pltpu.CompilerParams(
        dimension_semantics=dims,
        vmem_limit_bytes=vmem_limit,
    )


def _batch_tile(B, hidden, num_cores, block_b=None, residual=False):
    if block_b is not None:
        bb = max(8, _round_up(block_b, 8))
    elif num_cores >= 2:
        # Dual-TC (v7x): at least 2 grid steps per core so the per-core x DMA
        # pipelines against compute.
        bb = max(128, _round_up(pl.cdiv(B, 2 * num_cores), 8))
    elif residual and hidden >= 512:
        # Single-core big-hidden residual: keep f32 live state (h, z) small so
        # spill writeback doesn't become the binding vector-store slot (v5e).
        bb = 128
    else:
        # Single-core, small hidden: large M tiles amortize per-step overhead.
        bb = 512 if hidden <= 256 else 256
    bb = min(bb, _round_up(B, 8))
    return max(8, bb)


def _residual_should_stream(num_blocks, hidden, wbytes, nbuf_w, vmem_capacity):
    resident_weight_bytes = nbuf_w * 2 * num_blocks * hidden * hidden * wbytes
    return resident_weight_bytes > vmem_capacity // 4


def _normalize(h):
    mean = jnp.mean(h, axis=-1, keepdims=True)
    c = h - mean
    var = jnp.mean(c * c, axis=-1, keepdims=True)
    return c * jax.lax.rsqrt(var + LN_EPS)


# ---------------------------------------------------------------------------
# Kernels
# ---------------------------------------------------------------------------
def _mlp_kernel(x_ref, w1_ref, w2_ref, vec_ref, o_ref):
    # vec rows: 0=fc1 bias, 1=LN gamma, 2=LN beta, 3=fc2 bias (f32)
    v = vec_ref[...]
    b1, g1, be1, b2 = v[0:1], v[1:2], v[2:3], v[3:4]

    xb = x_ref[...].astype(w1_ref.dtype)                 # bf16 cast fused in-kernel
    h = jnp.dot(xb, w1_ref[...], preferred_element_type=jnp.float32) + b1
    h = _normalize(h) * g1 + be1                         # LN follows fc1+ReLU path,
    h = jnp.maximum(h, 0.0)                              # affine cannot be folded here
    h = jnp.dot(h.astype(w2_ref.dtype), w2_ref[...],
                preferred_element_type=jnp.float32) + b2
    o_ref[...] = jnp.maximum(h, 0.0).astype(o_ref.dtype)


def _residual_resident_kernel(x_ref, win_ref, invec_ref, w1_ref, w2_ref, vec_ref,
                              o_ref, *, num_blocks):
    xb = x_ref[...].astype(win_ref.dtype)
    h = jnp.dot(xb, win_ref[...], preferred_element_type=jnp.float32) + invec_ref[0:1]
    for k in range(num_blocks):                          # num_blocks is static
        # vecs rows: 0 = folded fc1 bias, 1 = fc2 bias (LN affine folded into W1)
        v = vec_ref[k]
        b1, b2 = v[0:1], v[1:2]
        z = _normalize(h)
        z = jnp.dot(z.astype(w1_ref.dtype), w1_ref[k],
                    preferred_element_type=jnp.float32) + b1
        z = jnp.maximum(z, 0.0)
        z = jnp.dot(z.astype(w2_ref.dtype), w2_ref[k],
                    preferred_element_type=jnp.float32) + b2
        h = h + z
    o_ref[...] = h.astype(o_ref.dtype)


def _residual_stream_kernel(x_ref, win_ref, invec_ref, w1_ref, w2_ref, vec_ref,
                            o_ref, h_ref):
    # grid = (batch_tiles, num_blocks); per-block weights streamed along k.
    k = pl.program_id(1)

    @pl.when(k == 0)
    def _():
        xb = x_ref[...].astype(win_ref.dtype)
        h_ref[...] = (jnp.dot(xb, win_ref[...],
                              preferred_element_type=jnp.float32)
                      + invec_ref[0:1])

    h = h_ref[...]
    z = _normalize(h)                                    # LN affine folded into W1/b1
    v = vec_ref[0]
    b1, b2 = v[0:1], v[1:2]
    z = jnp.dot(z.astype(w1_ref.dtype), w1_ref[0],
                preferred_element_type=jnp.float32) + b1
    z = jnp.maximum(z, 0.0)
    z = jnp.dot(z.astype(w2_ref.dtype), w2_ref[0],
                preferred_element_type=jnp.float32) + b2
    h = h + z
    h_ref[...] = h

    @pl.when(k == pl.num_programs(1) - 1)
    def _():
        o_ref[...] = h.astype(o_ref.dtype)


# ---------------------------------------------------------------------------
# Wrapper
# ---------------------------------------------------------------------------
@functools.partial(jax.jit, static_argnames=("block_type", "block_b",
                                             "residual_mode", "out_dtype"))
def sac_encoder(x, params, *, block_type="mlp", block_b=None,
                residual_mode="auto", out_dtype=jnp.float32):
    """SACEncoder forward. x: [B, dim] float32 -> [B, hidden] out_dtype."""
    B, dim = x.shape
    vmem_cap, num_cores = _tpu_vmem_and_cores()
    nbuf_w = 1 if _SINGLE_BUF_WEIGHTS else 2
    obytes = jnp.dtype(out_dtype).itemsize

    if block_type == "mlp":
        w1, w2, vec = params["w1"], params["w2"], params["vec"]
        dim_w, hidden = w1.shape
        if dim_w != dim:
            raise ValueError("params were initialized for a different input dim")
        wbytes = w1.dtype.itemsize
        bb = _batch_tile(B, hidden, num_cores, block_b, residual=False)
        grid = (pl.cdiv(B, bb),)
        vmem_est = (2 * bb * dim * 4 + 2 * bb * hidden * obytes
                    + nbuf_w * ((dim + hidden) * hidden * wbytes + 8 * hidden * 4)
                    + 6 * bb * hidden * 4)
        return pl.pallas_call(
            _mlp_kernel,
            out_shape=jax.ShapeDtypeStruct((B, hidden), out_dtype),
            grid_spec=pltpu.PrefetchScalarGridSpec(
                num_scalar_prefetch=0,
                grid=grid,
                in_specs=[
                    pl.BlockSpec((bb, dim), lambda i: (i, 0)),
                    _broadcast_spec((dim, hidden), 1),
                    _broadcast_spec((hidden, hidden), 1),
                    _broadcast_spec((8, hidden), 1),
                ],
                out_specs=pl.BlockSpec((bb, hidden), lambda i: (i, 0)),
            ),
            compiler_params=_compiler_params(vmem_est, vmem_cap, ("parallel",)),
        )(x, w1, w2, vec)

    if block_type != "residual":
        raise ValueError(f"unknown block_type: {block_type}")

    win, invec = params["win"], params["invec"]
    W1, W2, vecs = params["W1"], params["W2"], params["vecs"]
    dim_w, hidden = win.shape
    if dim_w != dim:
        raise ValueError("params were initialized for a different input dim")
    num_blocks = W1.shape[0]
    wbytes = W1.dtype.itemsize
    bb = _batch_tile(B, hidden, num_cores, block_b, residual=True)
    out_shape = jax.ShapeDtypeStruct((B, hidden), out_dtype)

    if residual_mode == "auto":
        stream = _residual_should_stream(num_blocks, hidden, wbytes, nbuf_w, vmem_cap)
    elif residual_mode in ("stream", "resident"):
        stream = residual_mode == "stream"
    else:
        raise ValueError(f"unknown residual_mode: {residual_mode}")

    if not stream:
        # All block weights VMEM-resident, fully unrolled (small configs).
        grid = (pl.cdiv(B, bb),)
        vmem_est = (2 * bb * dim * 4 + 2 * bb * hidden * obytes
                    + nbuf_w * (dim * hidden * wbytes + 8 * hidden * 4
                                + 2 * num_blocks * hidden * hidden * wbytes
                                + num_blocks * 8 * hidden * 4)
                    + 8 * bb * hidden * 4)
        kernel = functools.partial(_residual_resident_kernel, num_blocks=num_blocks)
        return pl.pallas_call(
            kernel,
            out_shape=out_shape,
            grid_spec=pltpu.PrefetchScalarGridSpec(
                num_scalar_prefetch=0,
                grid=grid,
                in_specs=[
                    pl.BlockSpec((bb, dim), lambda i: (i, 0)),
                    _broadcast_spec((dim, hidden), 1),
                    _broadcast_spec((8, hidden), 1),
                    _broadcast_spec((num_blocks, hidden, hidden), 1),
                    _broadcast_spec((num_blocks, hidden, hidden), 1),
                    _broadcast_spec((num_blocks, 8, hidden), 1),
                ],
                out_specs=pl.BlockSpec((bb, hidden), lambda i: (i, 0)),
            ),
            compiler_params=_compiler_params(vmem_est, vmem_cap, ("parallel",)),
        )(x, win, invec, W1, W2, vecs)

    # Streaming: per-block weights fetched along a trailing "arbitrary" grid
    # axis (double-buffered by the pipeline), h carried in VMEM scratch.
    grid = (pl.cdiv(B, bb), num_blocks)
    vmem_est = (2 * bb * dim * 4 + 2 * bb * hidden * obytes
                + nbuf_w * (dim * hidden * wbytes + 8 * hidden * 4)
                + 2 * (2 * hidden * hidden * wbytes + 8 * hidden * 4)
                + bb * hidden * 4                        # h carry scratch
                + 6 * bb * hidden * 4)
    return pl.pallas_call(
        _residual_stream_kernel,
        out_shape=out_shape,
        grid_spec=pltpu.PrefetchScalarGridSpec(
            num_scalar_prefetch=0,
            grid=grid,
            in_specs=[
                pl.BlockSpec((bb, dim), lambda i, k: (i, 0)),
                _broadcast_spec((dim, hidden), 2),
                _broadcast_spec((8, hidden), 2),
                pl.BlockSpec((1, hidden, hidden), lambda i, k: (k, 0, 0)),
                pl.BlockSpec((1, hidden, hidden), lambda i, k: (k, 0, 0)),
                pl.BlockSpec((1, 8, hidden), lambda i, k: (k, 0, 0)),
            ],
            out_specs=pl.BlockSpec((bb, hidden), lambda i, k: (i, 0)),
            scratch_shapes=[pltpu.VMEM((bb, hidden), jnp.float32)],
        ),
        compiler_params=_compiler_params(vmem_est, vmem_cap,
                                         ("parallel", "arbitrary")),
    )(x, win, invec, W1, W2, vecs)


# ---------------------------------------------------------------------------
# Parameter init (matches weights_init_: xavier_uniform weights, zero biases,
# default LayerNorm affine). Weights stored transposed ([in, out]) and bf16.
# For the residual branch the LayerNorm affine is folded into fc1 (exact,
# since LN output feeds fc1 linearly): W1' = gamma[:,None]*W1, b1' = beta@W1+b1.
# ---------------------------------------------------------------------------
def xavier_uniform(key, fan_in, fan_out, dtype=jnp.float32):
    bound = (6.0 / (fan_in + fan_out)) ** 0.5
    return jax.random.uniform(key, (fan_in, fan_out), dtype, -bound, bound)


def fold_ln_affine_into_linear(gamma, beta, w, b):
    return gamma[:, None] * w, beta @ w + b


def init_mlp_params(key, dim, hidden, weight_dtype=jnp.bfloat16):
    k1, k2 = jax.random.split(key)
    vec = jnp.zeros((8, hidden), jnp.float32).at[1].set(1.0)  # [b1, gamma, beta, b2]
    return {
        "w1": xavier_uniform(k1, dim, hidden).astype(weight_dtype),
        "w2": xavier_uniform(k2, hidden, hidden).astype(weight_dtype),
        "vec": vec,
    }


def init_residual_params(key, dim, hidden, num_blocks, weight_dtype=jnp.bfloat16):
    keys = jax.random.split(key, 1 + 2 * num_blocks)
    gamma = jnp.ones((hidden,), jnp.float32)
    beta = jnp.zeros((hidden,), jnp.float32)
    W1, W2, vecs = [], [], []
    for i in range(num_blocks):
        w1 = xavier_uniform(keys[1 + 2 * i], hidden, hidden)
        w2 = xavier_uniform(keys[2 + 2 * i], hidden, hidden)
        b1 = jnp.zeros((hidden,), jnp.float32)
        b2 = jnp.zeros((hidden,), jnp.float32)
        w1f, b1f = fold_ln_affine_into_linear(gamma, beta, w1, b1)
        W1.append(w1f)
        W2.append(w2)
        vecs.append(jnp.zeros((8, hidden), jnp.float32).at[0].set(b1f).at[1].set(b2))
    return {
        "win": xavier_uniform(keys[0], dim, hidden).astype(weight_dtype),
        "invec": jnp.zeros((8, hidden), jnp.float32),   # row 0 = input_layer bias
        "W1": jnp.stack(W1).astype(weight_dtype),
        "W2": jnp.stack(W2).astype(weight_dtype),
        "vecs": jnp.stack(vecs),                        # rows: [b1_folded, b2]
    }


# ---------------------------------------------------------------------------
# Pure-JAX reference (uses the same bf16-quantized / folded params, f32 math)
# ---------------------------------------------------------------------------
def _ln_ref(h, g, b):
    m = jnp.mean(h, axis=-1, keepdims=True)
    v = jnp.mean((h - m) ** 2, axis=-1, keepdims=True)
    return (h - m) / jnp.sqrt(v + LN_EPS) * g + b


def reference_forward(x, params, block_type):
    x = x.astype(jnp.float32)
    if block_type == "mlp":
        w1 = params["w1"].astype(jnp.float32)
        w2 = params["w2"].astype(jnp.float32)
        b1, g1, be1, b2 = (params["vec"][r] for r in range(4))
        h = jnp.maximum(_ln_ref(x @ w1 + b1, g1, be1), 0.0)
        return jnp.maximum(h @ w2 + b2, 0.0)
    win = params["win"].astype(jnp.float32)
    h = x @ win + params["invec"][0]
    for k in range(params["W1"].shape[0]):
        b1, b2 = params["vecs"][k, 0], params["vecs"][k, 1]
        m = jnp.mean(h, -1, keepdims=True)
        v = jnp.mean((h - m) ** 2, -1, keepdims=True)
        z = (h - m) / jnp.sqrt(v + LN_EPS)              # affine folded into W1/b1
        z = jnp.maximum(z @ params["W1"][k].astype(jnp.float32) + b1, 0.0)
        z = z @ params["W2"][k].astype(jnp.float32) + b2
        h = h + z
    return h


if __name__ == "__main__":
    key = jax.random.PRNGKey(0)
    kx, kp1, kp2 = jax.random.split(key, 3)

    batch, dim, hidden, num_blocks = 64, 24, 128, 2
    x = jax.random.normal(kx, (batch, dim), jnp.float32)

    # bf16 MXU operands with f32 accumulation -> compare with a loose tolerance.
    ATOL = RTOL = 5e-2

    # --- block_type == 'mlp' ---
    mlp_params = init_mlp_params(kp1, dim, hidden)
    out_mlp = jax.block_until_ready(sac_encoder(x, mlp_params, block_type="mlp"))
    ref_mlp = reference_forward(x, mlp_params, "mlp")
    assert out_mlp.shape == (batch, hidden)
    assert jnp.allclose(out_mlp, ref_mlp, atol=ATOL, rtol=RTOL), "mlp mismatch"

    # --- block_type == 'residual' (both resident and streaming paths) ---
    res_params = init_residual_params(kp2, dim, hidden, num_blocks)
    ref_res = reference_forward(x, res_params, "residual")
    for mode in ("resident", "stream"):
        out_res = jax.block_until_ready(
            sac_encoder(x, res_params, block_type="residual", residual_mode=mode))
        assert out_res.shape == (batch, hidden)
        assert jnp.allclose(out_res, ref_res, atol=ATOL, rtol=RTOL), \
            f"residual ({mode}) mismatch"

    print("KERNEL_OK")
</pallas_src>

<mosaic_0001>
module attributes {stable_mosaic.version = 11 : i64} {
  func.func @k(%arg0: i32, %arg1: memref<8x128xf32, #tpu.memory_space<vmem>>, %arg2: memref<8x128xf32, #tpu.memory_space<vmem>>, %arg3: memref<8x128xf32, #tpu.memory_space<vmem>>) attributes {dimension_semantics = [#tpu.dimension_semantics<arbitrary>], iteration_bounds = array<i64: 2>, scalar_prefetch = 0 : i64, scratch_operands = 0 : i64, tpu.core_type = #tpu.core_type<tc>, window_params = [{transform_indices = @transform_0, window_bounds = array<i64: 8, 128>}, {pipeline_mode = #tpu.pipeline_mode<synchronous>, transform_indices = @transform_1, window_bounds = array<i64: 8, 128>}, {transform_indices = @transform_2, window_bounds = array<i64: 8, 128>}]} {
    %c0 = arith.constant 0 : index
    %c0_0 = arith.constant 0 : index
    %0 = vector.load %arg1[%c0, %c0_0] : memref<8x128xf32, #tpu.memory_space<vmem>>, vector<8x128xf32>
    %c0_1 = arith.constant 0 : index
    %c0_2 = arith.constant 0 : index
    %1 = vector.load %arg2[%c0_1, %c0_2] : memref<8x128xf32, #tpu.memory_space<vmem>>, vector<8x128xf32>
    %2 = arith.addf %0, %1 : vector<8x128xf32>
    %c0_3 = arith.constant 0 : index
    %c0_4 = arith.constant 0 : index
    %3 = vector.load %arg3[%c0_3, %c0_4] : memref<8x128xf32, #tpu.memory_space<vmem>>, vector<8x128xf32>
    tpu.vector_store %arg3[%c0_3, %c0_4], %2 {strides = array<i32>} : memref<8x128xf32, #tpu.memory_space<vmem>>, vector<8x128xf32>,
    return
  }
  func.func @transform_0(%arg0: i32) -> (i32, i32) {
    %c0_i32 = arith.constant 0 : i32
    %c0_i32_0 = arith.constant 0 : i32
    return %arg0, %c0_i32 : i32, i32
  }
  func.func @transform_1(%arg0: i32) -> (i32, i32) {
    %c0_i32 = arith.constant 0 : i32
    %c0_i32_0 = arith.constant 0 : i32
    %c0_i32_1 = arith.constant 0 : i32
    return %c0_i32, %c0_i32_0 : i32, i32
  }
  func.func @transform_2(%arg0: i32) -> (i32, i32) {
    %c0_i32 = arith.constant 0 : i32
    %c0_i32_0 = arith.constant 0 : i32
    return %arg0, %c0_i32 : i32, i32
  }
}

module attributes {stable_mosaic.version = 11 : i64} {
  func.func @_mlp_kernel(%arg0: i32, %arg1: memref<64x24xf32, #tpu.memory_space<vmem>>, %arg2: memref<24x128xbf16, #tpu.memory_space<vmem>>, %arg3: memref<128x128xbf16, #tpu.memory_space<vmem>>, %arg4: memref<8x128xf32, #tpu.memory_space<vmem>>, %arg5: memref<64x128xf32, #tpu.memory_space<vmem>>) attributes {dimension_semantics = [#tpu.dimension_semantics<parallel>], iteration_bounds = array<i64: 1>, scalar_prefetch = 0 : i64, scratch_operands = 0 : i64, tpu.core_type = #tpu.core_type<tc>, window_params = [{transform_indices = @transform_0, window_bounds = array<i64: 64, 24>}, {pipeline_mode = #tpu.pipeline_mode<synchronous>, transform_indices = @transform_1, window_bounds = array<i64: 24, 128>}, {pipeline_mode = #tpu.pipeline_mode<synchronous>, transform_indices = @transform_2, window_bounds = array<i64: 128, 128>}, {pipeline_mode = #tpu.pipeline_mode<synchronous>, transform_indices = @transform_3, window_bounds = array<i64: 8, 128>}, {transform_indices = @transform_4, window_bounds = array<i64: 64, 128>}]} {
    %c0 = arith.constant 0 : index
    %c0_0 = arith.constant 0 : index
    %0 = vector.load %arg4[%c0, %c0_0] : memref<8x128xf32, #tpu.memory_space<vmem>>, vector<8x128xf32>
    %1 = vector.extract_strided_slice %0 {offsets = [0, 0], sizes = [1, 128], strides = [1, 1]} : vector<8x128xf32> to vector<1x128xf32>
    %2 = vector.extract_strided_slice %0 {offsets = [1, 0], sizes = [1, 128], strides = [1, 1]} : vector<8x128xf32> to vector<1x128xf32>
    %3 = vector.extract_strided_slice %0 {offsets = [2, 0], sizes = [1, 128], strides = [1, 1]} : vector<8x128xf32> to vector<1x128xf32>
    %4 = vector.extract_strided_slice %0 {offsets = [3, 0], sizes = [1, 128], strides = [1, 1]} : vector<8x128xf32> to vector<1x128xf32>
    %c0_1 = arith.constant 0 : index
    %c0_2 = arith.constant 0 : index
    %5 = vector.load %arg1[%c0_1, %c0_2] : memref<64x24xf32, #tpu.memory_space<vmem>>, vector<64x24xf32>
    %6 = arith.truncf %5 : vector<64x24xf32> to vector<64x24xbf16>
    %c0_3 = arith.constant 0 : index
    %c0_4 = arith.constant 0 : index
    %7 = vector.load %arg2[%c0_3, %c0_4] : memref<24x128xbf16, #tpu.memory_space<vmem>>, vector<24x128xbf16>
    %cst = arith.constant dense<0.000000e+00> : vector<64x128xf32>
    %8 = tpu.matmul %6, %7, %cst {dimension_numbers = #tpu.dot_dimension_numbers<[1], [0], [0], [1], [0, 0, 1, 1], [], []>} : vector<64x24xbf16>, vector<24x128xbf16>, vector<64x128xf32> -> vector<64x128xf32>
    %9 = vector.broadcast %1 : vector<1x128xf32> to vector<64x128xf32>
    %10 = arith.addf %8, %9 : vector<64x128xf32>
    %cst_5 = arith.constant dense<0.000000e+00> : vector<64xf32>
    %11 = vector.multi_reduction <add>, %10, %cst_5 [1] : vector<64x128xf32> to vector<64xf32>
    %12 = vector.shape_cast %11 : vector<64xf32> to vector<64x1xf32>
    %cst_6 = arith.constant 1.280000e+02 : f32
    %13 = vector.broadcast %cst_6 : f32 to vector<64x1xf32>
    %14 = arith.divf %12, %13 : vector<64x1xf32>
    %15 = vector.broadcast %14 : vector<64x1xf32> to vector<64x128xf32>
    %16 = arith.subf %10, %15 : vector<64x128xf32>
    %17 = arith.mulf %16, %16 : vector<64x128xf32>
    %cst_7 = arith.constant dense<0.000000e+00> : vector<64xf32>
    %18 = vector.multi_reduction <add>, %17, %cst_7 [1] : vector<64x128xf32> to vector<64xf32>
    %19 = vector.shape_cast %18 : vector<64xf32> to vector<64x1xf32>
    %cst_8 = arith.constant 1.280000e+02 : f32
    %20 = vector.broadcast %cst_8 : f32 to vector<64x1xf32>
    %21 = arith.divf %19, %20 : vector<64x1xf32>
    %cst_9 = arith.constant 9.99999974E-6 : f32
    %22 = vector.broadcast %cst_9 : f32 to vector<64x1xf32>
    %23 = arith.addf %21, %22 : vector<64x1xf32>
    %24 = math.rsqrt %23 : vector<64x1xf32>
    %25 = vector.broadcast %24 : vector<64x1xf32> to vector<64x128xf32>
    %26 = arith.mulf %16, %25 : vector<64x128xf32>
    %27 = vector.broadcast %2 : vector<1x128xf32> to vector<64x128xf32>
    %28 = arith.mulf %26, %27 : vector<64x128xf32>
    %29 = vector.broadcast %3 : vector<1x128xf32> to vector<64x128xf32>
    %30 = arith.addf %28, %29 : vector<64x128xf32>
    %cst_10 = arith.constant 0.000000e+00 : f32
    %31 = vector.broadcast %cst_10 : f32 to vector<64x128xf32>
    %32 = arith.maximumf %30, %31 : vector<64x128xf32>
    %33 = arith.truncf %32 : vector<64x128xf32> to vector<64x128xbf16>
    %c0_11 = arith.constant 0 : index
    %c0_12 = arith.constant 0 : index
    %34 = vector.load %arg3[%c0_11, %c0_12] : memref<128x128xbf16, #tpu.memory_space<vmem>>, vector<128x128xbf16>
    %cst_13 = arith.constant dense<0.000000e+00> : vector<64x128xf32>
    %35 = tpu.matmul %33, %34, %cst_13 {dimension_numbers = #tpu.dot_dimension_numbers<[1], [0], [0], [1], [0, 0, 1, 1], [], []>} : vector<64x128xbf16>, vector<128x128xbf16>, vector<64x128xf32> -> vector<64x128xf32>
    %36 = vector.broadcast %4 : vector<1x128xf32> to vector<64x128xf32>
    %37 = arith.addf %35, %36 : vector<64x128xf32>
    %cst_14 = arith.constant 0.000000e+00 : f32
    %38 = vector.broadcast %cst_14 : f32 to vector<64x128xf32>
    %39 = arith.maximumf %37, %38 : vector<64x128xf32>
    %c0_15 = arith.constant 0 : index
    %c0_16 = arith.constant 0 : index
    %40 = vector.load %arg5[%c0_15, %c0_16] : memref<64x128xf32, #tpu.memory_space<vmem>>, vector<64x128xf32>
    tpu.vector_store %arg5[%c0_15, %c0_16], %39 {strides = array<i32>} : memref<64x128xf32, #tpu.memory_space<vmem>>, vector<64x128xf32>,
    return
  }
  func.func @transform_0(%arg0: i32) -> (i32, i32) {
    %c0_i32 = arith.constant 0 : i32
    %c0_i32_0 = arith.constant 0 : i32
    return %arg0, %c0_i32 : i32, i32
  }
  func.func @transform_1(%arg0: i32) -> (i32, i32) {
    %c0_i32 = arith.constant 0 : i32
    %c0_i32_0 = arith.constant 0 : i32
    %c0_i32_1 = arith.constant 0 : i32
    return %c0_i32, %c0_i32_0 : i32, i32
  }
  func.func @transform_2(%arg0: i32) -> (i32, i32) {
    %c0_i32 = arith.constant 0 : i32
    %c0_i32_0 = arith.constant 0 : i32
    %c0_i32_1 = arith.constant 0 : i32
    return %c0_i32, %c0_i32_0 : i32, i32
  }
  func.func @transform_3(%arg0: i32) -> (i32, i32) {
    %c0_i32 = arith.constant 0 : i32
    %c0_i32_0 = arith.constant 0 : i32
    %c0_i32_1 = arith.constant 0 : i32
    return %c0_i32, %c0_i32_0 : i32, i32
  }
  func.func @transform_4(%arg0: i32) -> (i32, i32) {
    %c0_i32 = arith.constant 0 : i32
    %c0_i32_0 = arith.constant 0 : i32
    return %arg0, %c0_i32 : i32, i32
  }
}

</mosaic_0001>

<llo_original>
// kernel: tpu_custom_call.1
$region0: #{tpu_custom_call.1}
  #allocation0 [shape = 'u32[]', space=smem, size = 0x4, offset = 0x4, fixed_abs, tag = 'smem constant byte address 0x4 - core index']
  #allocation1 [shape = 'u32[72,128]{1,0:T(1,128)}', space=vmem, size = 0x9000, scoped, tag = 'internal scratch']
  %s0 = inlined_call_operand.hbm [shape: f32[16,128], index: 0, kind: input, shape index: {}]
  %s1 = inlined_call_operand.hbm [shape: f32[8,128], index: 1, kind: input, shape index: {}]
  %s2 = inlined_call_operand.hbm [shape: f32[16,128], index: 2, kind: output, shape index: {}]
  %s3 = sld [smem:[#allocation0]]
  $region49: #{tpu_custom_call.1} parent=0
    _
  %s5 = ssub.s32 1, %s3
  %s6 = scalar_select 0, %s5, %s3
  $region1: #{tpu_custom_call.1} parent=0
    #allocation2 [shape = 'u8[8192]{0}', space=vmem, size = 0x2000, scoped, tag = 'input window, operand 0']
    #allocation3 [shape = 's32[2]{0}', space=sflag, size = 0x8, scoped, tag = 'scoped memory for tpu_custom_call.1']
    #allocation4 [shape = 's32[2]{0}', space=sflag, size = 0x8, scoped, tag = 'scoped memory for tpu_custom_call.1']
    #allocation5 [shape = 'u8[4096]{0}', space=vmem, size = 0x1000, scoped, tag = 'input window, operand 1, single buffered']
    #allocation6 [shape = 's32[1]{0}', space=sflag, size = 0x4, scoped, tag = 'scoped memory for tpu_custom_call.1']
    #allocation7 [shape = 'u8[8192]{0}', space=vmem, size = 0x2000, scoped, tag = 'output window, operand 0']
    %7 = vsyncpa [#allocation3], 0
    %s8 = scalar_lea.sflag [#allocation3], 1
    %9 = vsyncpa %s8, 0
    %10 = vsyncpa [#allocation6], 0
    %11 = vsyncpa [#allocation4], 0
    %s12 = scalar_lea.sflag [#allocation4], 1
    %13 = vsyncpa %s12, 0
    loop: start=0, step=1, limit=4
    $region2: #{tpu_custom_call.1} parent=1 // loop_pre_header
      _
    $region3: #{tpu_custom_call.1} parent=1 // loop_header
      %s15 = sphi 0, %s19
      %p16 = scmp.ge.s32.totalorder %s15, 4
      %s25 = sphi 0, %s27
      %s28 = sphi 0, %s25
      %s29 = sphi 0, %s28
      %s45 = sphi 0, %s29
      %s49 = sphi 0, %s49
      %s51 = sphi 0, %s49
      %s52 = sphi 0, %s51
      %s66 = sphi 0, %s52
      %s72 = sphi 0, %s74
      %s75 = sphi 0, %s72
      %s76 = sphi 0, %s75
      %s92 = sphi 0, %s76
    $region4: #{tpu_custom_call.1} parent=1 // loop_header_branch
      %18 = sbr.rel (%p16) target = $region8
    $region5: #{tpu_custom_call.1} parent=1 // loop_body
      %s20 = ssub.s32 %s15, 1
      %s21 = ssub.s32 %s15, 2
      %s22 = sadd.s32 %s15, 1
      %s23 = ssub.s32 %s15, %s22
      %p24 = scmp.eq.s32.totalorder %s23, 0
      %s26 = sadd.s32 %s25, 1
      %s27 = scalar_select %p24, %s25, %s26
      %p30 = pneg %p24
      %p31 = scmp.eq.s32.totalorder %s15, 1
      %p32 = por %p30, %p31
      %p33 = scmp.ne.s32.totalorder %s25, %s28
      %p34 = scmp.eq.s32.totalorder %s15, 0
      %p35 = por %p33, %p34
      %p36 = scmp.ne.s32.totalorder %s25, %s28
      %p37 = scmp.eq.s32.totalorder %s20, 1
      %p38 = por %p36, %p37
      %p39 = scmp.ne.s32.totalorder %s28, %s29
      %p40 = scmp.eq.s32.totalorder %s20, 0
      %p41 = por %p39, %p40
      %p42 = scmp.ne.s32.totalorder %s28, %s29
      %p43 = scmp.eq.s32.totalorder %s21, 1
      %p44 = por %p42, %p43
      %p46 = scmp.ne.s32.totalorder %s29, %s45
      %p47 = scmp.eq.s32.totalorder %s21, 0
      %p48 = por %p46, %p47
      %s50 = sadd.s32 %s49, 1
      %p53 = scmp.eq.s32.totalorder %s15, 1
      %p54 = scmp.ne.s32.totalorder %s49, %s51
      %p55 = scmp.eq.s32.totalorder %s15, 0
      %p56 = por %p54, %p55
      %p57 = scmp.ne.s32.totalorder %s49, %s51
      %p58 = scmp.eq.s32.totalorder %s20, 1
      %p59 = por %p57, %p58
      %p60 = scmp.ne.s32.totalorder %s51, %s52
      %p61 = scmp.eq.s32.totalorder %s20, 0
      %p62 = por %p60, %p61
      %p63 = scmp.ne.s32.totalorder %s51, %s52
      %p64 = scmp.eq.s32.totalorder %s21, 1
      %p65 = por %p63, %p64
      %p67 = scmp.ne.s32.totalorder %s52, %s66
      %p68 = scmp.eq.s32.totalorder %s21, 0
      %p69 = por %p67, %p68
      %s70 = ssub.s32 %s15, %s22
      %p71 = scmp.eq.s32.totalorder %s70, 0
      %s73 = sadd.s32 %s72, 1
      %s74 = scalar_select %p71, %s72, %s73
      %p77 = pneg %p71
      %p78 = scmp.eq.s32.totalorder %s15, 1
      %p79 = por %p77, %p78
      %p80 = scmp.ne.s32.totalorder %s72, %s75
      %p81 = scmp.eq.s32.totalorder %s15, 0
      %p82 = por %p80, %p81
      %p83 = scmp.ne.s32.totalorder %s72, %s75
      %p84 = scmp.eq.s32.totalorder %s20, 1
      %p85 = por %p83, %p84
      %p86 = scmp.ne.s32.totalorder %s75, %s76
      %p87 = scmp.eq.s32.totalorder %s20, 0
      %p88 = por %p86, %p87
      %p89 = scmp.ne.s32.totalorder %s75, %s76
      %p90 = scmp.eq.s32.totalorder %s21, 1
      %p91 = por %p89, %p90
      %p93 = scmp.ne.s32.totalorder %s76, %s92
      %p94 = scmp.eq.s32.totalorder %s21, 0
      %p95 = por %p93, %p94
      %p96 = scmp.le.s32.totalorder 1, %s15
      %p97 = scmp.lt.s32.totalorder %s15, 3
      %p98 = pnand %p96, %p97
      %p99 = pneg %p98
      // Predicated region
      $region9: #{tpu_custom_call.1} parent=5 // pred_check
        _
      $region10: #{tpu_custom_call.1} parent=5 // pred_check_branch
        %101 = sbr.rel (%p98) target = $region12
      $region11: #{tpu_custom_call.1} parent=5 // pred_region
        %s102 = ssub.s32 %s15, 1
        // Predicated region
        $region13: #{tpu_custom_call.1} parent=11 // pred_check
          %p103 = pneg %p62
        $region14: #{tpu_custom_call.1} parent=11 // pred_check_branch
          %105 = sbr.rel (%p103) target = $region16
        $region15: #{tpu_custom_call.1} parent=11 // pred_region
          %107 = vsyncadd [#allocation6], 0
          %s109 = sshll.u32 %s1, 4
          %s110 = int_to_ptr.hbm [resolvable:$true] %s109
          %s111 = sshll.u32 [#allocation5], 4
          %s112 = int_to_ptr.vmem [resolvable:$true] %s111
          %114 = dma.hbm_to_vmem [thread:$0]  %s110, 128, %s112, [#allocation6]
        $region16: #{tpu_custom_call.1} parent=11 // pred_fallthru
          _
      $region12: #{tpu_custom_call.1} parent=5 // pred_fallthru
        _
      %p115 = scmp.lt.s32.totalorder %s15, 2
      // Predicated region
      $region17: #{tpu_custom_call.1} parent=5 // pred_check
        %p116 = pneg %p115
      $region18: #{tpu_custom_call.1} parent=5 // pred_check_branch
        %118 = sbr.rel (%p116) target = $region20
      $region19: #{tpu_custom_call.1} parent=5 // pred_region
        // Predicated region
        $region21: #{tpu_custom_call.1} parent=19 // pred_check
          %p119 = pneg %p35
        $region22: #{tpu_custom_call.1} parent=19 // pred_check_branch
          %121 = sbr.rel (%p119) target = $region24
        $region23: #{tpu_custom_call.1} parent=19 // pred_region
          %s122 = sand.u32 %s25, 1
          %s123 = scalar_lea.sflag [#allocation3], %s122
          %s124 = sand.u32 %s25, 1
          %s125 = smul.addr %s124, 8
          %s126 = scalar_lea.vmem [#allocation2], %s125
          %128 = vsyncadd %s123, 0
          %s129 = smul.addr %s15, 8
          %s130 = scalar_lea.hbm %s0, %s129
          %s132 = sshll.u32 %s130, 4
          %s133 = int_to_ptr.hbm [resolvable:$true] %s132
          %s134 = sshll.u32 %s126, 4
          %s135 = int_to_ptr.vmem [resolvable:$true] %s134
          %137 = dma.hbm_to_vmem [thread:$0]  %s133, 128, %s135, %s123
        $region24: #{tpu_custom_call.1} parent=19 // pred_fallthru
          _
      $region20: #{tpu_custom_call.1} parent=5 // pred_fallthru
        _
      %p138 = scmp.le.s32.totalorder 1, %s15
      %p139 = scmp.lt.s32.totalorder %s15, 3
      %p140 = pnand %p138, %p139
      %p141 = pneg %p140
      // Predicated region
      $region25: #{tpu_custom_call.1} parent=5 // pred_check
        _
      $region26: #{tpu_custom_call.1} parent=5 // pred_check_branch
        %143 = sbr.rel (%p140) target = $region28
      $region27: #{tpu_custom_call.1} parent=5 // pred_region
        %s144 = ssub.s32 %s15, 1
        %s145 = sand.u32 %s28, 1
        %s146 = scalar_lea.sflag [#allocation3], %s145
        %s147 = sand.u32 %s28, 1
        %s148 = smul.addr %s147, 8
        %s149 = scalar_lea.vmem [#allocation2], %s148
        // Predicated region
        $region29: #{tpu_custom_call.1} parent=27 // pred_check
          %p150 = pneg %p41
        $region30: #{tpu_custom_call.1} parent=27 // pred_check_branch
          %152 = sbr.rel (%p150) target = $region32
        $region31: #{tpu_custom_call.1} parent=27 // pred_region
          %154 = dma.done %s146, 128
        $region32: #{tpu_custom_call.1} parent=27 // pred_fallthru
          _
        // Predicated region
        $region33: #{tpu_custom_call.1} parent=27 // pred_check
          %p155 = pneg %p62
        $region34: #{tpu_custom_call.1} parent=27 // pred_check_branch
          %157 = sbr.rel (%p155) target = $region36
        $region35: #{tpu_custom_call.1} parent=27 // pred_region
          %159 = dma.done [#allocation6], 128
        $region36: #{tpu_custom_call.1} parent=27 // pred_fallthru
          _
        %s160 = sand.u32 %s28, 1
        %s161 = scalar_lea.sflag [#allocation3], %s160
        %s162 = sand.u32 %s28, 1
        %s163 = smul.addr %s162, 8
        %s164 = scalar_lea.vmem [#allocation2], %s163
        %p165 = pneg %p41
        %p166 = pneg %p38
        %p167 = pneg %p62
        %p168 = pneg %p59
        %p169 = pneg %p88
        %p170 = pneg %p85
        %s171 = sand.u32 %s75, 1
        %s172 = scalar_lea.sflag [#allocation4], %s171
        %s173 = sand.u32 %s75, 1
        %s174 = smul.addr %s173, 8
        %s175 = scalar_lea.vmem [#allocation7], %s174
        %v176 = vld [vmem:[%s149] sm:$0xff]
        %v177 = vld [vmem:[#allocation5] sm:$0xff]
        %v178 = vadd.f32 %v176, %v177
        %179 = vst [vmem:[%s175] sm:$0xff] %v178
        %s180 = sand.u32 %s75, 1
        %s181 = scalar_lea.sflag [#allocation4], %s180
        %s182 = sand.u32 %s75, 1
        %s183 = smul.addr %s182, 8
        %s184 = scalar_lea.vmem [#allocation7], %s183
        // Predicated region
        $region37: #{tpu_custom_call.1} parent=27 // pred_check
          %p185 = pneg %p85
        $region38: #{tpu_custom_call.1} parent=27 // pred_check_branch
          %187 = sbr.rel (%p185) target = $region40
        $region39: #{tpu_custom_call.1} parent=27 // pred_region
          %189 = vsyncadd %s181, 0
          %s190 = smul.addr %s20, 8
          %s191 = scalar_lea.hbm %s2, %s190
          %s193 = sshll.u32 %s184, 4
          %s194 = int_to_ptr.vmem [resolvable:$true] %s193
          %s195 = sshll.u32 %s191, 4
          %s196 = int_to_ptr.hbm [resolvable:$true] %s195
          %198 = dma.vmem_to_hbm [thread:$0]  %s194, 128, %s196, %s181
        $region40: #{tpu_custom_call.1} parent=27 // pred_fallthru
          _
      $region28: #{tpu_custom_call.1} parent=5 // pred_fallthru
        _
      %p199 = scmp.le.s32.totalorder 2, %s15
      // Predicated region
      $region41: #{tpu_custom_call.1} parent=5 // pred_check
        %p200 = pneg %p199
      $region42: #{tpu_custom_call.1} parent=5 // pred_check_branch
        %202 = sbr.rel (%p200) target = $region44
      $region43: #{tpu_custom_call.1} parent=5 // pred_region
        %s203 = ssub.s32 %s15, 2
        // Predicated region
        $region45: #{tpu_custom_call.1} parent=43 // pred_check
          %p204 = pneg %p91
        $region46: #{tpu_custom_call.1} parent=43 // pred_check_branch
          %206 = sbr.rel (%p204) target = $region48
        $region47: #{tpu_custom_call.1} parent=43 // pred_region
          %s207 = sand.u32 %s76, 1
          %s208 = scalar_lea.sflag [#allocation4], %s207
          %s209 = sand.u32 %s76, 1
          %s210 = smul.addr %s209, 8
          %s211 = scalar_lea.vmem [#allocation7], %s210
          %213 = dma.done %s208, 128
        $region48: #{tpu_custom_call.1} parent=43 // pred_fallthru
          _
      $region44: #{tpu_custom_call.1} parent=5 // pred_fallthru
        _
    $region6: #{tpu_custom_call.1} parent=1 // loop_footer
      %s19 = sadd.s32 1, %s15
    $region7: #{tpu_custom_call.1} parent=1 // loop_footer_branch
      %14 = sbr.rel target = $region3
    $region8: #{tpu_custom_call.1} parent=1 // loop_exit
      _
    %214 = vsyncpa [#allocation3], 1
    %s215 = scalar_lea.sflag [#allocation3], 1
    %216 = vsyncpa %s215, 1
    %217 = vsyncpa [#allocation6], 1
    %218 = vsyncpa [#allocation4], 1
    %s219 = scalar_lea.sflag [#allocation4], 1
    %220 = vsyncpa %s219, 1

// kernel: sac_encoder.1
$region0: #{sac_encoder.1}
  #allocation0 [shape = 'u32[]', space=smem, size = 0x4, offset = 0x4, fixed_abs, tag = 'smem constant byte address 0x4 - core index']
  #allocation1 [shape = 'u32[72,128]{1,0:T(1,128)}', space=vmem, size = 0x9000, scoped, tag = 'internal scratch']
  %s0 = inlined_call_operand.vmem [shape: f32[64,24], index: 0, kind: input, shape index: {}]
  %s1 = inlined_call_operand.vmem [shape: bf16[24,128], index: 1, kind: input, shape index: {}]
  %s2 = inlined_call_operand.vmem [shape: bf16[128,128], index: 2, kind: input, shape index: {}]
  %s3 = inlined_call_operand.vmem [shape: f32[8,128], index: 3, kind: input, shape index: {}]
  %s4 = inlined_call_operand.hbm [shape: f32[64,128], index: 4, kind: output, shape index: {}]
  %s5 = sld [smem:[#allocation0]]
  $region26: #{sac_encoder.1} parent=0
    _
  %s7 = ssub.s32 1, %s5
  %s8 = scalar_select 0, %s7, %s5
  $region1: #{sac_encoder.1} parent=0
    #allocation2 [shape = 'u8[32768]{0}', space=vmem, size = 0x8000, scoped, tag = 'output window, operand 0, single buffered']
    #allocation3 [shape = 's32[1]{0}', space=sflag, size = 0x4, scoped, tag = 'scoped memory for sac_encoder.1']
    %9 = vsyncpa [#allocation3], 0
    // Predicated region
    $region2: #{sac_encoder.1} parent=1 // pred_check
      _
    $region3: #{sac_encoder.1} parent=1 // pred_check_branch
      %11 = sbr.rel (0) target = $region5
    $region4: #{sac_encoder.1} parent=1 // pred_region
      _
    $region5: #{sac_encoder.1} parent=1 // pred_fallthru
      _
    // Predicated region
    $region6: #{sac_encoder.1} parent=1 // pred_check
      _
    $region7: #{sac_encoder.1} parent=1 // pred_check_branch
      %13 = sbr.rel (0) target = $region9
    $region8: #{sac_encoder.1} parent=1 // pred_region
      _
    $region9: #{sac_encoder.1} parent=1 // pred_fallthru
      _
    // Predicated region
    $region10: #{sac_encoder.1} parent=1 // pred_check
      _
    $region11: #{sac_encoder.1} parent=1 // pred_check_branch
      %15 = sbr.rel (0) target = $region13
    $region12: #{sac_encoder.1} parent=1 // pred_region
      _
    $region13: #{sac_encoder.1} parent=1 // pred_fallthru
      _
    // Predicated region
    $region14: #{sac_encoder.1} parent=1 // pred_check
      _
    $region15: #{sac_encoder.1} parent=1 // pred_check_branch
      %17 = sbr.rel (0) target = $region17
    $region16: #{sac_encoder.1} parent=1 // pred_region
      _
    $region17: #{sac_encoder.1} parent=1 // pred_fallthru
      _
    %v19 = vld [vmem:[%s3] sm:$0xff]
    %v20 = vld [vmem:[%s0] sm:$0xff]
    %v21 = vld [vmem:[%s0 + $0x8] sm:$0xff]
    %v22 = vld [vmem:[%s0 + $0x10] sm:$0xff]
    %v23 = vld [vmem:[%s0 + $0x18] sm:$0xff]
    %v24 = vld [vmem:[%s0 + $0x20] sm:$0xff]
    %v25 = vld [vmem:[%s0 + $0x28] sm:$0xff]
    %v26 = vld [vmem:[%s0 + $0x30] sm:$0xff]
    %v27 = vld [vmem:[%s0 + $0x38] sm:$0xff]
    %v28 = vpack.c.bf16 %v21, %v20
    %v29 = vpack.c.bf16 %v23, %v22
    %v30 = vpack.c.bf16 %v25, %v24
    %v31 = vpack.c.bf16 %v27, %v26
    %v32 = vld [vmem:[%s1] sm:$0xf]
    %v33 = vld [vmem:[%s1 + $0x4] sm:$0xf]
    %v34 = vld [vmem:[%s1 + $0x8] sm:$0xf]
    %v35 = vperm.slane %v19, 0
    %v39 = vunpack.c.l.b16 %v32
    %v40 = vunpack.c.l.b16 %v33
    %v41 = vunpack.c.l.b16 %v34
    %v42 = vpack.c.b16 %v40, %v39
    %v43 = vpack.c.b16 %v41, %v41
    %vm45 = vcmask 195584
    %v47 = vsel %vm45, %v28, 0
    %v50 = vsel %vm45, %v29, 0
    %v53 = vsel %vm45, %v30, 0
    %v56 = vsel %vm45, %v31, 0
    %vm58 = vcmask 1043456
    %v60 = vsel %vm58, %v43, 0
    %62 = vmatpush.bf16.msra.mxu0 0
    %63 = vmatpush.bf16.msra.mxu0 0
    %64 = vmatpush.bf16.msra.mxu0 0
    %65 = vmatpush.bf16.msra.mxu0 0
    %66 = vmatpush.bf16.msra.mxu0 0
    %67 = vmatpush.bf16.msra.mxu0 0
    %68 = vmatpush.bf16.msra.mxu0 %v60
    %69 = vmatpush.bf16.msra.mxu0 %v42
    %70 = vmatmul.bf16.gmra.mxu0 %v47
    %v71 = vpop.f32.mrf.mxu0
    %v72 = vadd.f32 %v35, %v71
    %v73 = vpop.f32.mrf.mxu0
    %v74 = vadd.f32 %v35, %v73
    %75 = vmatmul.bf16.gmra.mxu0 %v50
    %v76 = vpop.f32.mrf.mxu0
    %v77 = vadd.f32 %v35, %v76
    %v78 = vpop.f32.mrf.mxu0
    %v79 = vadd.f32 %v35, %v78
    %80 = vmatmul.bf16.gmra.mxu0 %v53
    %v81 = vpop.f32.mrf.mxu0
    %v82 = vadd.f32 %v35, %v81
    %v83 = vpop.f32.mrf.mxu0
    %v84 = vadd.f32 %v35, %v83
    %85 = vmatmul.bf16.gmra.mxu0 %v56
    %v86 = vpop.f32.mrf.mxu0
    %v87 = vadd.f32 %v35, %v86
    %v88 = vpop.f32.mrf.mxu0
    %v89 = vadd.f32 %v35, %v88
    %90 = vdwg.mxu0
    %91 = vadd.xlane.f32.xlu0 %v72
    %v92 = vpop.xlane.xlu0 %91
    %93 = vadd.xlane.f32.xlu0 %v74
    %v94 = vpop.xlane.xlu0 %93
    %95 = vadd.xlane.f32.xlu0 %v77
    %v96 = vpop.xlane.xlu0 %95
    %97 = vadd.xlane.f32.xlu0 %v79
    %v98 = vpop.xlane.xlu0 %97
    %99 = vadd.xlane.f32.xlu0 %v82
    %v100 = vpop.xlane.xlu0 %99
    %101 = vadd.xlane.f32.xlu0 %v84
    %v102 = vpop.xlane.xlu0 %101
    %103 = vadd.xlane.f32.xlu0 %v87
    %v104 = vpop.xlane.xlu0 %103
    %105 = vadd.xlane.f32.xlu0 %v89
    %v106 = vpop.xlane.xlu0 %105
    %v107 = vrcp.pop 128.0
    %v108 = vmul.f32 128.0, %v107
    %v109 = vsub.f32 1.0, %v108
    %v110 = vmul.f32 %v107, %v109
    %v111 = vadd.f32 %v107, %v110
    %vm112 = vweird.f32 %v107
    %v113 = vsel %vm112, %v107, %v111
    %v114 = vmul.f32 %v92, %v113
    %v115 = vmul.f32 %v94, %v113
    %v116 = vmul.f32 %v96, %v113
    %v117 = vmul.f32 %v98, %v113
    %v118 = vmul.f32 %v100, %v113
    %v119 = vmul.f32 %v102, %v113
    %v120 = vmul.f32 %v104, %v113
    %v121 = vmul.f32 %v106, %v113
    %v122 = vsub.f32 %v72, %v114
    %v123 = vsub.f32 %v74, %v115
    %v124 = vsub.f32 %v77, %v116
    %v125 = vsub.f32 %v79, %v117
    %v126 = vsub.f32 %v82, %v118
    %v127 = vsub.f32 %v84, %v119
    %v128 = vsub.f32 %v87, %v120
    %v129 = vsub.f32 %v89, %v121
    %v130 = vmul.f32 %v122, %v122
    %v131 = vmul.f32 %v123, %v123
    %v132 = vmul.f32 %v124, %v124
    %v133 = vmul.f32 %v125, %v125
    %v134 = vmul.f32 %v126, %v126
    %v135 = vmul.f32 %v127, %v127
    %v136 = vmul.f32 %v128, %v128
    %v137 = vmul.f32 %v129, %v129
    %138 = vadd.xlane.f32.xlu0 %v130
    %v139 = vpop.xlane.xlu0 %138
    %140 = vadd.xlane.f32.xlu0 %v131
    %v141 = vpop.xlane.xlu0 %140
    %142 = vadd.xlane.f32.xlu0 %v132
    %v143 = vpop.xlane.xlu0 %142
    %144 = vadd.xlane.f32.xlu0 %v133
    %v145 = vpop.xlane.xlu0 %144
    %146 = vadd.xlane.f32.xlu0 %v134
    %v147 = vpop.xlane.xlu0 %146
    %148 = vadd.xlane.f32.xlu0 %v135
    %v149 = vpop.xlane.xlu0 %148
    %150 = vadd.xlane.f32.xlu0 %v136
    %v151 = vpop.xlane.xlu0 %150
    %152 = vadd.xlane.f32.xlu0 %v137
    %v153 = vpop.xlane.xlu0 %152
    %v154 = vmul.f32 %v139, %v113
    %v155 = vmul.f32 %v141, %v113
    %v156 = vmul.f32 %v143, %v113
    %v157 = vmul.f32 %v145, %v113
    %v158 = vmul.f32 %v147, %v113
    %v159 = vmul.f32 %v149, %v113
    %v160 = vmul.f32 %v151, %v113
    %v161 = vmul.f32 %v153, %v113
    %v162 = vadd.f32 %v154, 1e-05
    %v163 = vadd.f32 %v155, 1e-05
    %v164 = vadd.f32 %v156, 1e-05
    %v165 = vadd.f32 %v157, 1e-05
    %v166 = vadd.f32 %v158, 1e-05
    %v167 = vadd.f32 %v159, 1e-05
    %v168 = vadd.f32 %v160, 1e-05
    %v169 = vadd.f32 %v161, 1e-05
    %v170 = vrsqrt.pop %v162
    %v171 = vmul.f32 %v170, %v162
    %v172 = vmul.f32 %v171, %v170
    %v173 = vmul.f32 0.5, %v172
    %v174 = vsub.f32 1.5, %v173
    %v175 = vmul.f32 %v170, %v174
    %vm176 = vweird.f32 %v162
    %vm177 = vweird.f32 %v170
    %vm178 = vmor %vm176, %vm177
    %v179 = vsel %vm178, %v170, %v175
    %v180 = vrsqrt.pop %v163
    %v181 = vmul.f32 %v180, %v163
    %v182 = vmul.f32 %v181, %v180
    %v183 = vmul.f32 0.5, %v182
    %v184 = vsub.f32 1.5, %v183
    %v185 = vmul.f32 %v180, %v184
    %vm186 = vweird.f32 %v163
    %vm187 = vweird.f32 %v180
    %vm188 = vmor %vm186, %vm187
    %v189 = vsel %vm188, %v180, %v185
    %v190 = vrsqrt.pop %v164
    %v191 = vmul.f32 %v190, %v164
    %v192 = vmul.f32 %v191, %v190
    %v193 = vmul.f32 0.5, %v192
    %v194 = vsub.f32 1.5, %v193
    %v195 = vmul.f32 %v190, %v194
    %vm196 = vweird.f32 %v164
    %vm197 = vweird.f32 %v190
    %vm198 = vmor %vm196, %vm197
    %v199 = vsel %vm198, %v190, %v195
    %v200 = vrsqrt.pop %v165
    %v201 = vmul.f32 %v200, %v165
    %v202 = vmul.f32 %v201, %v200
    %v203 = vmul.f32 0.5, %v202
    %v204 = vsub.f32 1.5, %v203
    %v205 = vmul.f32 %v200, %v204
    %vm206 = vweird.f32 %v165
    %vm207 = vweird.f32 %v200
    %vm208 = vmor %vm206, %vm207
    %v209 = vsel %vm208, %v200, %v205
    %v210 = vrsqrt.pop %v166
    %v211 = vmul.f32 %v210, %v166
    %v212 = vmul.f32 %v211, %v210
    %v213 = vmul.f32 0.5, %v212
    %v214 = vsub.f32 1.5, %v213
    %v215 = vmul.f32 %v210, %v214
    %vm216 = vweird.f32 %v166
    %vm217 = vweird.f32 %v210
    %vm218 = vmor %vm216, %vm217
    %v219 = vsel %vm218, %v210, %v215
    %v220 = vrsqrt.pop %v167
    %v221 = vmul.f32 %v220, %v167
    %v222 = vmul.f32 %v221, %v220
    %v223 = vmul.f32 0.5, %v222
    %v224 = vsub.f32 1.5, %v223
    %v225 = vmul.f32 %v220, %v224
    %vm226 = vweird.f32 %v167
    %vm227 = vweird.f32 %v220
    %vm228 = vmor %vm226, %vm227
    %v229 = vsel %vm228, %v220, %v225
    %v230 = vrsqrt.pop %v168
    %v231 = vmul.f32 %v230, %v168
    %v232 = vmul.f32 %v231, %v230
    %v233 = vmul.f32 0.5, %v232
    %v234 = vsub.f32 1.5, %v233
    %v235 = vmul.f32 %v230, %v234
    %vm236 = vweird.f32 %v168
    %vm237 = vweird.f32 %v230
    %vm238 = vmor %vm236, %vm237
    %v239 = vsel %vm238, %v230, %v235
    %v240 = vrsqrt.pop %v169
    %v241 = vmul.f32 %v240, %v169
    %v242 = vmul.f32 %v241, %v240
    %v243 = vmul.f32 0.5, %v242
    %v244 = vsub.f32 1.5, %v243
    %v245 = vmul.f32 %v240, %v244
    %vm246 = vweird.f32 %v169
    %vm247 = vweird.f32 %v240
    %vm248 = vmor %vm246, %vm247
    %v249 = vsel %vm248, %v240, %v245
    %v250 = vmul.f32 %v122, %v179
    %v251 = vmul.f32 %v123, %v189
    %v252 = vmul.f32 %v124, %v199
    %v253 = vmul.f32 %v125, %v209
    %v254 = vmul.f32 %v126, %v219
    %v255 = vmul.f32 %v127, %v229
    %v256 = vmul.f32 %v128, %v239
    %v257 = vmul.f32 %v129, %v249
    %v258 = vperm.slane %v19, 1
    %v259 = vmul.f32 %v250, %v258
    %v260 = vmul.f32 %v251, %v258
    %v261 = vmul.f32 %v252, %v258
    %v262 = vmul.f32 %v253, %v258
    %v263 = vmul.f32 %v254, %v258
    %v264 = vmul.f32 %v255, %v258
    %v265 = vmul.f32 %v256, %v258
    %v266 = vmul.f32 %v257, %v258
    %v267 = vperm.slane %v19, 2
    %v268 = vadd.f32 %v259, %v267
    %v269 = vadd.f32 %v260, %v267
    %v270 = vadd.f32 %v261, %v267
    %v271 = vadd.f32 %v262, %v267
    %v272 = vadd.f32 %v263, %v267
    %v273 = vadd.f32 %v264, %v267
    %v274 = vadd.f32 %v265, %v267
    %v275 = vadd.f32 %v266, %v267
    %v276 = vmax.f32 %v268, 0.0
    %v277 = vmax.f32 %v269, 0.0
    %v278 = vmax.f32 %v270, 0.0
    %v279 = vmax.f32 %v271, 0.0
    %v280 = vmax.f32 %v272, 0.0
    %v281 = vmax.f32 %v273, 0.0
    %v282 = vmax.f32 %v274, 0.0
    %v283 = vmax.f32 %v275, 0.0
    %v284 = vpack.c.bf16 %v277, %v276
    %v285 = vpack.c.bf16 %v279, %v278
    %v286 = vpack.c.bf16 %v281, %v280
    %v287 = vpack.c.bf16 %v283, %v282
    %v288 = vld [vmem:[%s2] sm:$0xf]
    %v289 = vld [vmem:[%s2 + $0x4] sm:$0xf]
    %v290 = vld [vmem:[%s2 + $0x8] sm:$0xf]
    %v291 = vld [vmem:[%s2 + $0xc] sm:$0xf]
    %v292 = vld [vmem:[%s2 + $0x10] sm:$0xf]
    %v293 = vld [vmem:[%s2 + $0x14] sm:$0xf]
    %v294 = vld [vmem:[%s2 + $0x18] sm:$0xf]
    %v295 = vld [vmem:[%s2 + $0x1c] sm:$0xf]
    %v296 = vld [vmem:[%s2 + $0x20] sm:$0xf]
    %v297 = vld [vmem:[%s2 + $0x24] sm:$0xf]
    %v298 = vld [vmem:[%s2 + $0x28] sm:$0xf]
    %v299 = vld [vmem:[%s2 + $0x2c] sm:$0xf]
    %v300 = vld [vmem:[%s2 + $0x30] sm:$0xf]
    %v301 = vld [vmem:[%s2 + $0x34] sm:$0xf]
    %v302 = vld [vmem:[%s2 + $0x38] sm:$0xf]
    %v303 = vld [vmem:[%s2 + $0x3c] sm:$0xf]
    %v304 = vperm.slane %v19, 3
    %v321 = vunpack.c.l.b16 %v288
    %v322 = vunpack.c.l.b16 %v289
    %v323 = vunpack.c.l.b16 %v290
    %v324 = vunpack.c.l.b16 %v291
    %v325 = vunpack.c.l.b16 %v292
    %v326 = vunpack.c.l.b16 %v293
    %v327 = vunpack.c.l.b16 %v294
    %v328 = vunpack.c.l.b16 %v295
    %v329 = vunpack.c.l.b16 %v296
    %v330 = vunpack.c.l.b16 %v297
    %v331 = vunpack.c.l.b16 %v298
    %v332 = vunpack.c.l.b16 %v299
    %v333 = vunpack.c.l.b16 %v300
    %v334 = vunpack.c.l.b16 %v301
    %v335 = vunpack.c.l.b16 %v302
    %v336 = vunpack.c.l.b16 %v303
    %v337 = vpack.c.b16 %v322, %v321
    %v338 = vpack.c.b16 %v324, %v323
    %v339 = vpack.c.b16 %v326, %v325
    %v340 = vpack.c.b16 %v328, %v327
    %v341 = vpack.c.b16 %v330, %v329
    %v342 = vpack.c.b16 %v332, %v331
    %v343 = vpack.c.b16 %v334, %v333
    %v344 = vpack.c.b16 %v336, %v335
    %353 = vmatpush.bf16.msra.mxu0 %v344
    %354 = vmatpush.bf16.msra.mxu0 %v343
    %355 = vmatpush.bf16.msra.mxu0 %v342
    %356 = vmatpush.bf16.msra.mxu0 %v341
    %357 = vmatpush.bf16.msra.mxu0 %v340
    %358 = vmatpush.bf16.msra.mxu0 %v339
    %359 = vmatpush.bf16.msra.mxu0 %v338
    %360 = vmatpush.bf16.msra.mxu0 %v337
    %361 = vmatmul.bf16.gmra.mxu0 %v284
    %v362 = vpop.f32.mrf.mxu0
    %v363 = vadd.f32 %v304, %v362
    %v364 = vpop.f32.mrf.mxu0
    %v365 = vadd.f32 %v304, %v364
    %366 = vmatmul.bf16.gmra.mxu0 %v285
    %v367 = vpop.f32.mrf.mxu0
    %v368 = vadd.f32 %v304, %v367
    %v369 = vpop.f32.mrf.mxu0
    %v370 = vadd.f32 %v304, %v369
    %371 = vmatmul.bf16.gmra.mxu0 %v286
    %v372 = vpop.f32.mrf.mxu0
    %v373 = vadd.f32 %v304, %v372
    %v374 = vpop.f32.mrf.mxu0
    %v375 = vadd.f32 %v304, %v374
    %376 = vmatmul.bf16.gmra.mxu0 %v287
    %v377 = vpop.f32.mrf.mxu0
    %v378 = vadd.f32 %v304, %v377
    %v379 = vpop.f32.mrf.mxu0
    %v380 = vadd.f32 %v304, %v379
    %381 = vdwg.mxu0
    %v382 = vmax.f32 %v363, 0.0
    %v383 = vmax.f32 %v365, 0.0
    %v384 = vmax.f32 %v368, 0.0
    %v385 = vmax.f32 %v370, 0.0
    %v386 = vmax.f32 %v373, 0.0
    %v387 = vmax.f32 %v375, 0.0
    %v388 = vmax.f32 %v378, 0.0
    %v389 = vmax.f32 %v380, 0.0
    %390 = vst [vmem:[#allocation2] sm:$0xff] %v382
    %391 = vst [vmem:[#allocation2 + $0x8] sm:$0xff] %v383
    %392 = vst [vmem:[#allocation2 + $0x10] sm:$0xff] %v384
    %393 = vst [vmem:[#allocation2 + $0x18] sm:$0xff] %v385
    %394 = vst [vmem:[#allocation2 + $0x20] sm:$0xff] %v386
    %395 = vst [vmem:[#allocation2 + $0x28] sm:$0xff] %v387
    %396 = vst [vmem:[#allocation2 + $0x30] sm:$0xff] %v388
    %397 = vst [vmem:[#allocation2 + $0x38] sm:$0xff] %v389
    // Predicated region
    $region18: #{sac_encoder.1} parent=1 // pred_check
      _
    $region19: #{sac_encoder.1} parent=1 // pred_check_branch
      %399 = sbr.rel (0) target = $region21
    $region20: #{sac_encoder.1} parent=1 // pred_region
      %401 = vsyncadd [#allocation3], 0
      %s402 = sshll.u32 [#allocation2], 4
      %s403 = int_to_ptr.vmem [resolvable:$true] %s402
      %s404 = sshll.u32 %s4, 4
      %s405 = int_to_ptr.hbm [resolvable:$true] %s404
      %410 = dma.vmem_to_hbm [thread:$0]  %s403, 1024, %s405, [#allocation3], 128, 128, 8
    $region21: #{sac_encoder.1} parent=1 // pred_fallthru
      _
    // Predicated region
    $region22: #{sac_encoder.1} parent=1 // pred_check
      _
    $region23: #{sac_encoder.1} parent=1 // pred_check_branch
      %412 = sbr.rel (0) target = $region25
    $region24: #{sac_encoder.1} parent=1 // pred_region
      %414 = dma.done [#allocation3], 1024
    $region25: #{sac_encoder.1} parent=1 // pred_fallthru
      _
    %415 = vsyncpa [#allocation3], 1

</llo_original>
